<compile_context>
chip_gen: v6e
topology: v6e:2x2x1
jax: 0.10.0
libtpu: 0.0.40
codegen_flags: <defaults>
</compile_context>

<pallas_src>
import jax
import jax.numpy as jnp
import numpy as np
from jax.experimental import pallas as pl
from jax.experimental.pallas import tpu as pltpu

N_VERTEX = 128
F_IN = 16
F_OUT = 32
DIM = 3          # number of isoam supports (x, y, z)


def _isogcn_fused_kernel(lt_ref, xt_ref, w_self_ref, b_self_ref,
                         w_coef_ref, b_coef_ref, ot_ref):
    """Fused IsoGCN forward, transposed (lane-dense) layout.

    lt_ref:   (N, N)      f32, L^T where L = sum_k G_k @ G_k (precomputed field constant)
    xt_ref:   (F_IN, N)   f32, x transposed (vertex dim on lanes)
    w_*_ref:  (F_OUT, F_IN) f32;  b_*_ref: (F_OUT, 1) f32
    ot_ref:   (F_OUT, N)  f32, output transposed (lane-dense, unmasked vst)
    """
    xt = xt_ref[...]                                               # (F_IN, N)

    # Folded [convolution, contraction] propagation:
    #   lap^T = x^T @ L^T  -- one uninterrupted (F_IN, N) @ (N, N) MXU stream.
    lap_t = jnp.dot(xt, lt_ref[...],
                    preferred_element_type=jnp.float32)            # (F_IN, N)

    # Self network (mul_order="ah_w"): h^T = tanh(W_self @ lap^T + b_self).
    h_t = jnp.tanh(
        jnp.dot(w_self_ref[...], lap_t, preferred_element_type=jnp.float32)
        + b_self_ref[...])                                         # (F_OUT, N)

    # Coefficient network on the rank-0 input x: coeff^T = tanh(W_coef @ x^T + b_coef).
    c_t = jnp.tanh(
        jnp.dot(w_coef_ref[...], xt, preferred_element_type=jnp.float32)
        + b_coef_ref[...])                                         # (F_OUT, N)

    # einsum('i...f,if->i...f') with rank-0 h reduces to an elementwise product.
    ot_ref[...] = (h_t * c_t).astype(ot_ref.dtype)


def precompute_combined_laplacian_t(supports):
    """L^T with L = sum_k G_k @ G_k.

    The supports are field constants (constant through training/prediction in the module),
    so this runs ONCE per field, outside the per-forward-call path.  HIGHEST precision so the
    fold stays within the f32 tolerance of the unfolded two-stage reference.
    """
    lap_op = jnp.einsum("kij,kjl->il", supports, supports,
                        precision=jax.lax.Precision.HIGHEST)       # (N, N)
    return lap_op.T


def isogcn_forward(x, lap_t, w_self, b_self, w_coef, b_coef):
    n, f_in = x.shape
    f_out = w_self.shape[0]

    # Tiny layout plumbing only (x is 8 KB); the heavy support prep was hoisted out of this path.
    xt = x.T                                                       # (F_IN, N)
    b_self2 = b_self.reshape(f_out, 1)
    b_coef2 = b_coef.reshape(f_out, 1)

    vmem_spec = pl.BlockSpec(memory_space=pltpu.MemorySpace.VMEM)

    flops = 2 * (f_in * n * n + 2 * f_out * f_in * n) + 3 * f_out * n
    bytes_accessed = 4 * (n * n + f_in * n + 2 * f_out * f_in + 2 * f_out + f_out * n)
    transcendentals = 2 * f_out * n

    # Single fused invocation, no grid: every operand fits comfortably in VMEM (~90 KB total),
    # L is DMA'd exactly once, and all intermediates live in vregs.
    out_t = pl.pallas_call(
        _isogcn_fused_kernel,
        out_shape=jax.ShapeDtypeStruct((f_out, n), jnp.float32),
        in_specs=[vmem_spec] * 6,
        out_specs=vmem_spec,
        cost_estimate=pl.CostEstimate(
            flops=int(flops),
            transcendentals=int(transcendentals),
            bytes_accessed=int(bytes_accessed)),
    )(lap_t, xt, w_self, b_self2, w_coef, b_coef2)

    return out_t.T                                                 # back to (N, F_OUT)


def isogcn_reference(x, supports, w_self, b_self, w_coef, b_coef):
    """Unfolded two-stage reference, exactly mirroring the PyTorch module's forward."""
    hp = jax.lax.Precision.HIGHEST
    conv = jnp.stack(
        [jnp.matmul(supports[k], x, precision=hp) for k in range(DIM)], axis=1)   # (n, 3, F_IN)
    lap = sum(jnp.matmul(supports[k], conv[:, k, :], precision=hp)
              for k in range(DIM))                                                 # (n, F_IN)
    h = jnp.tanh(jnp.matmul(lap, w_self.T, precision=hp) + b_self)
    coeff = jnp.tanh(jnp.matmul(x, w_coef.T, precision=hp) + b_coef)
    return h * coeff


if __name__ == "__main__":
    key = jax.random.PRNGKey(0)
    k_x, k_g, k_ws, k_bs, k_wc, k_bc = jax.random.split(key, 6)

    x = jax.random.normal(k_x, (N_VERTEX, F_IN), dtype=jnp.float32) * 0.5
    # Dense stand-ins for the sparse isoam support matrices (n_vertex, n_vertex).
    supports = jax.random.normal(k_g, (DIM, N_VERTEX, N_VERTEX), dtype=jnp.float32) * 0.05

    # Deterministic parameter init (Linear weight shape (out, in), bias shape (out,)).
    w_self = jax.random.normal(k_ws, (F_OUT, F_IN), dtype=jnp.float32) * (1.0 / np.sqrt(F_IN))
    b_self = jax.random.normal(k_bs, (F_OUT,), dtype=jnp.float32) * 0.1
    w_coef = jax.random.normal(k_wc, (F_OUT, F_IN), dtype=jnp.float32) * (1.0 / np.sqrt(F_IN))
    b_coef = jax.random.normal(k_bc, (F_OUT,), dtype=jnp.float32) * 0.1

    # One-time field-constant prep (NOT part of the per-call forward path).
    lap_t = jax.block_until_ready(precompute_combined_laplacian_t(supports))

    out = isogcn_forward(x, lap_t, w_self, b_self, w_coef, b_coef)
    out = jax.block_until_ready(out)

    ref = isogcn_reference(x, supports, w_self, b_self, w_coef, b_coef)
    np.testing.assert_allclose(np.asarray(out), np.asarray(ref), rtol=1e-4, atol=1e-4)

    print("KERNEL_OK")
</pallas_src>

<mosaic_0001>
module attributes {stable_mosaic.version = 11 : i64} {
  func.func @_isogcn_fused_kernel(%arg0: memref<128x128xf32, #tpu.memory_space<vmem>>, %arg1: memref<16x128xf32, #tpu.memory_space<vmem>>, %arg2: memref<32x16xf32, #tpu.memory_space<vmem>>, %arg3: memref<32x1xf32, #tpu.memory_space<vmem>>, %arg4: memref<32x16xf32, #tpu.memory_space<vmem>>, %arg5: memref<32x1xf32, #tpu.memory_space<vmem>>, %arg6: memref<32x128xf32, #tpu.memory_space<vmem>>) attributes {dimension_semantics = [], scalar_prefetch = 0 : i64, scratch_operands = 0 : i64, tpu.core_type = #tpu.core_type<tc>} {
    %c0 = arith.constant 0 : index
    %c0_0 = arith.constant 0 : index
    %0 = vector.load %arg1[%c0, %c0_0] : memref<16x128xf32, #tpu.memory_space<vmem>>, vector<16x128xf32>
    %c0_1 = arith.constant 0 : index
    %c0_2 = arith.constant 0 : index
    %1 = vector.load %arg0[%c0_1, %c0_2] : memref<128x128xf32, #tpu.memory_space<vmem>>, vector<128x128xf32>
    %cst = arith.constant dense<0.000000e+00> : vector<16x128xf32>
    %2 = tpu.matmul %0, %1, %cst {dimension_numbers = #tpu.dot_dimension_numbers<[1], [0], [0], [1], [0, 0, 1, 1], [], []>} : vector<16x128xf32>, vector<128x128xf32>, vector<16x128xf32> -> vector<16x128xf32>
    %c0_3 = arith.constant 0 : index
    %c0_4 = arith.constant 0 : index
    %3 = vector.load %arg2[%c0_3, %c0_4] : memref<32x16xf32, #tpu.memory_space<vmem>>, vector<32x16xf32>
    %cst_5 = arith.constant dense<0.000000e+00> : vector<32x128xf32>
    %4 = tpu.matmul %3, %2, %cst_5 {dimension_numbers = #tpu.dot_dimension_numbers<[1], [0], [0], [1], [0, 0, 1, 1], [], []>} : vector<32x16xf32>, vector<16x128xf32>, vector<32x128xf32> -> vector<32x128xf32>
    %c0_6 = arith.constant 0 : index
    %c0_7 = arith.constant 0 : index
    %5 = vector.load %arg3[%c0_6, %c0_7] : memref<32x1xf32, #tpu.memory_space<vmem>>, vector<32x1xf32>
    %6 = vector.broadcast %5 : vector<32x1xf32> to vector<32x128xf32>
    %7 = arith.addf %4, %6 : vector<32x128xf32>
    %8 = math.tanh %7 : vector<32x128xf32>
    %c0_8 = arith.constant 0 : index
    %c0_9 = arith.constant 0 : index
    %9 = vector.load %arg4[%c0_8, %c0_9] : memref<32x16xf32, #tpu.memory_space<vmem>>, vector<32x16xf32>
    %cst_10 = arith.constant dense<0.000000e+00> : vector<32x128xf32>
    %10 = tpu.matmul %9, %0, %cst_10 {dimension_numbers = #tpu.dot_dimension_numbers<[1], [0], [0], [1], [0, 0, 1, 1], [], []>} : vector<32x16xf32>, vector<16x128xf32>, vector<32x128xf32> -> vector<32x128xf32>
    %c0_11 = arith.constant 0 : index
    %c0_12 = arith.constant 0 : index
    %11 = vector.load %arg5[%c0_11, %c0_12] : memref<32x1xf32, #tpu.memory_space<vmem>>, vector<32x1xf32>
    %12 = vector.broadcast %11 : vector<32x1xf32> to vector<32x128xf32>
    %13 = arith.addf %10, %12 : vector<32x128xf32>
    %14 = math.tanh %13 : vector<32x128xf32>
    %15 = arith.mulf %8, %14 : vector<32x128xf32>
    %c0_13 = arith.constant 0 : index
    %c0_14 = arith.constant 0 : index
    %16 = vector.load %arg6[%c0_13, %c0_14] : memref<32x128xf32, #tpu.memory_space<vmem>>, vector<32x128xf32>
    tpu.vector_store %arg6[%c0_13, %c0_14], %15 {strides = array<i32>} : memref<32x128xf32, #tpu.memory_space<vmem>>, vector<32x128xf32>,
    return
  }
}

</mosaic_0001>

<llo_original>
// kernel: tpu_custom_call.1
$region0: #{tpu_custom_call.1}
  #allocation0 [shape = 'u32[]', space=smem, size = 0x4, offset = 0x4, fixed_abs, tag = 'smem constant byte address 0x4 - core index']
  #allocation1 [shape = 'u32[144,128]{1,0:T(1,128)}', space=vmem, size = 0x12000, scoped, tag = 'internal scratch']
  %s0 = inlined_call_operand.vmem [shape: f32[128,128], index: 0, kind: input, shape index: {}]
  %s1 = inlined_call_operand.vmem [shape: f32[16,128], index: 1, kind: input, shape index: {}]
  %s2 = inlined_call_operand.vmem [shape: f32[32,16], index: 2, kind: input, shape index: {}]
  %s3 = inlined_call_operand.vmem [shape: f32[32,1], index: 3, kind: input, shape index: {}]
  %s4 = inlined_call_operand.vmem [shape: f32[32,16], index: 4, kind: input, shape index: {}]
  %s5 = inlined_call_operand.vmem [shape: f32[32,1], index: 5, kind: input, shape index: {}]
  %s6 = inlined_call_operand.hbm [shape: f32[32,128], index: 6, kind: output, shape index: {}]
  %s7 = sld [smem:[#allocation0]]
  $region34: #{tpu_custom_call.1} parent=0
    _
  %s9 = ssub.s32 1, %s7
  %s10 = scalar_select 0, %s9, %s7
  $region1: #{tpu_custom_call.1} parent=0
    #allocation2 [shape = 'u8[16384]{0}', space=vmem, size = 0x4000, scoped, tag = 'output window, operand 0, single buffered']
    #allocation3 [shape = 's32[1]{0}', space=sflag, size = 0x4, scoped, tag = 'scoped memory for tpu_custom_call.1']
    %11 = vsyncpa [#allocation3], 0
    // Predicated region
    $region2: #{tpu_custom_call.1} parent=1 // pred_check
      _
    $region3: #{tpu_custom_call.1} parent=1 // pred_check_branch
      %13 = sbr.rel (0) target = $region5
    $region4: #{tpu_custom_call.1} parent=1 // pred_region
      _
    $region5: #{tpu_custom_call.1} parent=1 // pred_fallthru
      _
    // Predicated region
    $region6: #{tpu_custom_call.1} parent=1 // pred_check
      _
    $region7: #{tpu_custom_call.1} parent=1 // pred_check_branch
      %15 = sbr.rel (0) target = $region9
    $region8: #{tpu_custom_call.1} parent=1 // pred_region
      _
    $region9: #{tpu_custom_call.1} parent=1 // pred_fallthru
      _
    // Predicated region
    $region10: #{tpu_custom_call.1} parent=1 // pred_check
      _
    $region11: #{tpu_custom_call.1} parent=1 // pred_check_branch
      %17 = sbr.rel (0) target = $region13
    $region12: #{tpu_custom_call.1} parent=1 // pred_region
      _
    $region13: #{tpu_custom_call.1} parent=1 // pred_fallthru
      _
    // Predicated region
    $region14: #{tpu_custom_call.1} parent=1 // pred_check
      _
    $region15: #{tpu_custom_call.1} parent=1 // pred_check_branch
      %19 = sbr.rel (0) target = $region17
    $region16: #{tpu_custom_call.1} parent=1 // pred_region
      _
    $region17: #{tpu_custom_call.1} parent=1 // pred_fallthru
      _
    // Predicated region
    $region18: #{tpu_custom_call.1} parent=1 // pred_check
      _
    $region19: #{tpu_custom_call.1} parent=1 // pred_check_branch
      %21 = sbr.rel (0) target = $region21
    $region20: #{tpu_custom_call.1} parent=1 // pred_region
      _
    $region21: #{tpu_custom_call.1} parent=1 // pred_fallthru
      _
    // Predicated region
    $region22: #{tpu_custom_call.1} parent=1 // pred_check
      _
    $region23: #{tpu_custom_call.1} parent=1 // pred_check_branch
      %23 = sbr.rel (0) target = $region25
    $region24: #{tpu_custom_call.1} parent=1 // pred_region
      _
    $region25: #{tpu_custom_call.1} parent=1 // pred_fallthru
      _
    %v24 = vld [vmem:[%s1] sm:$0xff]
    %v25 = vld [vmem:[%s1 + $0x8] sm:$0xff]
    %v26 = vld [vmem:[%s0] sm:$0xff]
    %v27 = vld [vmem:[%s0 + $0x8] sm:$0xff]
    %v28 = vld [vmem:[%s0 + $0x10] sm:$0xff]
    %v29 = vld [vmem:[%s0 + $0x18] sm:$0xff]
    %v30 = vld [vmem:[%s0 + $0x20] sm:$0xff]
    %v31 = vld [vmem:[%s0 + $0x28] sm:$0xff]
    %v32 = vld [vmem:[%s0 + $0x30] sm:$0xff]
    %v33 = vld [vmem:[%s0 + $0x38] sm:$0xff]
    %v34 = vld [vmem:[%s0 + $0x40] sm:$0xff]
    %v35 = vld [vmem:[%s0 + $0x48] sm:$0xff]
    %v36 = vld [vmem:[%s0 + $0x50] sm:$0xff]
    %v37 = vld [vmem:[%s0 + $0x58] sm:$0xff]
    %v38 = vld [vmem:[%s0 + $0x60] sm:$0xff]
    %v39 = vld [vmem:[%s0 + $0x68] sm:$0xff]
    %v40 = vld [vmem:[%s0 + $0x70] sm:$0xff]
    %v41 = vld [vmem:[%s0 + $0x78] sm:$0xff]
    %42 = vmatprep.subr.mxu0 0.0
    %43 = vmatpush1.msra.mxu0 %v41
    %44 = vmatprep.subr.mxu0 0.0
    %45 = vmatpush1.msra.mxu0 %v40
    %46 = vmatprep.subr.mxu0 0.0
    %47 = vmatpush1.msra.mxu0 %v39
    %48 = vmatprep.subr.mxu0 0.0
    %49 = vmatpush1.msra.mxu0 %v38
    %50 = vmatprep.subr.mxu0 0.0
    %51 = vmatpush1.msra.mxu0 %v37
    %52 = vmatprep.subr.mxu0 0.0
    %53 = vmatpush1.msra.mxu0 %v36
    %54 = vmatprep.subr.mxu0 0.0
    %55 = vmatpush1.msra.mxu0 %v35
    %56 = vmatprep.subr.mxu0 0.0
    %57 = vmatpush1.msra.mxu0 %v34
    %58 = vmatprep.subr.mxu0 0.0
    %59 = vmatpush1.msra.mxu0 %v33
    %60 = vmatprep.subr.mxu0 0.0
    %61 = vmatpush1.msra.mxu0 %v32
    %62 = vmatprep.subr.mxu0 0.0
    %63 = vmatpush1.msra.mxu0 %v31
    %64 = vmatprep.subr.mxu0 0.0
    %65 = vmatpush1.msra.mxu0 %v30
    %66 = vmatprep.subr.mxu0 0.0
    %67 = vmatpush1.msra.mxu0 %v29
    %68 = vmatprep.subr.mxu0 0.0
    %69 = vmatpush1.msra.mxu0 %v28
    %70 = vmatprep.subr.mxu0 0.0
    %71 = vmatpush1.msra.mxu0 %v27
    %72 = vmatprep.subr.mxu0 0.0
    %73 = vmatpush1.msra.mxu0 %v26
    %74 = vmatprep.subr.mxu0 0.0
    %75 = vmatpush2.msra.mxu0 0.0
    %76 = vmatprep.subr.mxu0 0.0
    %77 = vmatpush2.msra.mxu0 0.0
    %78 = vmatprep.subr.mxu0 0.0
    %79 = vmatpush2.msra.mxu0 0.0
    %80 = vmatprep.subr.mxu0 0.0
    %81 = vmatpush2.msra.mxu0 0.0
    %82 = vmatprep.subr.mxu0 0.0
    %83 = vmatpush2.msra.mxu0 0.0
    %84 = vmatprep.subr.mxu0 0.0
    %85 = vmatpush2.msra.mxu0 0.0
    %86 = vmatprep.subr.mxu0 0.0
    %87 = vmatpush2.msra.mxu0 0.0
    %88 = vmatprep.subr.mxu0 0.0
    %89 = vmatpush2.msra.mxu0 0.0
    %90 = vmatprep.subr.mxu0 0.0
    %91 = vmatpush2.msra.mxu0 0.0
    %92 = vmatprep.subr.mxu0 0.0
    %93 = vmatpush2.msra.mxu0 0.0
    %94 = vmatprep.subr.mxu0 0.0
    %95 = vmatpush2.msra.mxu0 0.0
    %96 = vmatprep.subr.mxu0 0.0
    %97 = vmatpush2.msra.mxu0 0.0
    %98 = vmatprep.subr.mxu0 0.0
    %99 = vmatpush2.msra.mxu0 0.0
    %100 = vmatprep.subr.mxu0 0.0
    %101 = vmatpush2.msra.mxu0 0.0
    %102 = vmatprep.subr.mxu0 0.0
    %103 = vmatpush2.msra.mxu0 0.0
    %104 = vmatprep.subr.mxu0 0.0
    %105 = vmatpush2.msra.mxu0 0.0
    %106 = vmatprep.mubr.f32.mxu0 0.0
    %107 = vmatmul.mubr.f32.gmra.mxu0 %v24
    %v108 = vpop.f32.mrf.mxu0
    %v109 = vadd.f32 0.0, %v108
    %v110 = vpop.f32.mrf.mxu0
    %111 = vmatprep.mubr.f32.mxu0 0.0
    %112 = vmatmul.mubr.f32.gmra.mxu0 %v25
    %v113 = vpop.f32.mrf.mxu0
    %v114 = vadd.f32 0.0, %v113
    %v115 = vpop.f32.mrf.mxu0
    %116 = vdwg.mxu0
    %v117 = vld [vmem:[%s2] sm:$0xff]
    %v118 = vld [vmem:[%s2 + $0x8] sm:$0xff]
    %v119 = vld [vmem:[%s2 + $0x10] sm:$0xff]
    %v120 = vld [vmem:[%s2 + $0x18] sm:$0xff]
    %v121 = vld [vmem:[%s3] sm:$0xff]
    %v122 = vld [vmem:[%s3 + $0x8] sm:$0xff]
    %v123 = vld [vmem:[%s3 + $0x10] sm:$0xff]
    %v124 = vld [vmem:[%s3 + $0x18] sm:$0xff]
    %126 = vset.pattern.permute.xlu0 0
    %127 = vperm.xlu0 %126, %v121
    %v128 = vpop.permute.xlu0 %127
    %131 = vset.pattern.permute.xlu0 0
    %132 = vperm.xlu0 %131, %v122
    %v133 = vpop.permute.xlu0 %132
    %136 = vset.pattern.permute.xlu0 0
    %137 = vperm.xlu0 %136, %v123
    %v138 = vpop.permute.xlu0 %137
    %141 = vset.pattern.permute.xlu0 0
    %142 = vperm.xlu0 %141, %v124
    %v143 = vpop.permute.xlu0 %142
    %vm145 = vcmask 130048
    %v147 = vsel %vm145, %v117, 0
    %v150 = vsel %vm145, %v118, 0
    %v153 = vsel %vm145, %v119, 0
    %v156 = vsel %vm145, %v120, 0
    %158 = vmatprep.subr.mxu0 0.0
    %159 = vmatpush1.msra.mxu0 0.0
    %160 = vmatprep.subr.mxu0 0.0
    %161 = vmatpush1.msra.mxu0 0.0
    %162 = vmatprep.subr.mxu0 0.0
    %163 = vmatpush1.msra.mxu0 0.0
    %164 = vmatprep.subr.mxu0 0.0
    %165 = vmatpush1.msra.mxu0 0.0
    %166 = vmatprep.subr.mxu0 0.0
    %167 = vmatpush1.msra.mxu0 0.0
    %168 = vmatprep.subr.mxu0 0.0
    %169 = vmatpush1.msra.mxu0 0.0
    %170 = vmatprep.subr.mxu0 0.0
    %171 = vmatpush1.msra.mxu0 0.0
    %172 = vmatprep.subr.mxu0 0.0
    %173 = vmatpush1.msra.mxu0 0.0
    %174 = vmatprep.subr.mxu0 0.0
    %175 = vmatpush1.msra.mxu0 0.0
    %176 = vmatprep.subr.mxu0 0.0
    %177 = vmatpush1.msra.mxu0 0.0
    %178 = vmatprep.subr.mxu0 0.0
    %179 = vmatpush1.msra.mxu0 0.0
    %180 = vmatprep.subr.mxu0 0.0
    %181 = vmatpush1.msra.mxu0 0.0
    %182 = vmatprep.subr.mxu0 0.0
    %183 = vmatpush1.msra.mxu0 0.0
    %184 = vmatprep.subr.mxu0 0.0
    %185 = vmatpush1.msra.mxu0 0.0
    %186 = vmatprep.subr.mxu0 0.0
    %187 = vmatpush1.msra.mxu0 %v114
    %188 = vmatprep.subr.mxu0 0.0
    %189 = vmatpush1.msra.mxu0 %v109
    %190 = vmatprep.subr.mxu0 0.0
    %191 = vmatpush2.msra.mxu0 0.0
    %192 = vmatprep.subr.mxu0 0.0
    %193 = vmatpush2.msra.mxu0 0.0
    %194 = vmatprep.subr.mxu0 0.0
    %195 = vmatpush2.msra.mxu0 0.0
    %196 = vmatprep.subr.mxu0 0.0
    %197 = vmatpush2.msra.mxu0 0.0
    %198 = vmatprep.subr.mxu0 0.0
    %199 = vmatpush2.msra.mxu0 0.0
    %200 = vmatprep.subr.mxu0 0.0
    %201 = vmatpush2.msra.mxu0 0.0
    %202 = vmatprep.subr.mxu0 0.0
    %203 = vmatpush2.msra.mxu0 0.0
    %204 = vmatprep.subr.mxu0 0.0
    %205 = vmatpush2.msra.mxu0 0.0
    %206 = vmatprep.subr.mxu0 0.0
    %207 = vmatpush2.msra.mxu0 0.0
    %208 = vmatprep.subr.mxu0 0.0
    %209 = vmatpush2.msra.mxu0 0.0
    %210 = vmatprep.subr.mxu0 0.0
    %211 = vmatpush2.msra.mxu0 0.0
    %212 = vmatprep.subr.mxu0 0.0
    %213 = vmatpush2.msra.mxu0 0.0
    %214 = vmatprep.subr.mxu0 0.0
    %215 = vmatpush2.msra.mxu0 0.0
    %216 = vmatprep.subr.mxu0 0.0
    %217 = vmatpush2.msra.mxu0 0.0
    %218 = vmatprep.subr.mxu0 0.0
    %219 = vmatpush2.msra.mxu0 0.0
    %220 = vmatprep.subr.mxu0 0.0
    %221 = vmatpush2.msra.mxu0 0.0
    %222 = vmatprep.mubr.f32.mxu0 0.0
    %223 = vmatmul.mubr.f32.gmra.mxu0 %v147
    %v224 = vpop.f32.mrf.mxu0
    %v225 = vadd.f32 %v128, %v224
    %v226 = vpop.f32.mrf.mxu0
    %227 = vmatprep.mubr.f32.mxu0 0.0
    %228 = vmatmul.mubr.f32.gmra.mxu0 %v150
    %v229 = vpop.f32.mrf.mxu0
    %v230 = vadd.f32 %v133, %v229
    %v231 = vpop.f32.mrf.mxu0
    %232 = vmatprep.mubr.f32.mxu0 0.0
    %233 = vmatmul.mubr.f32.gmra.mxu0 %v153
    %v234 = vpop.f32.mrf.mxu0
    %v235 = vadd.f32 %v138, %v234
    %v236 = vpop.f32.mrf.mxu0
    %237 = vmatprep.mubr.f32.mxu0 0.0
    %238 = vmatmul.mubr.f32.gmra.mxu0 %v156
    %v239 = vpop.f32.mrf.mxu0
    %v240 = vadd.f32 %v143, %v239
    %v241 = vpop.f32.mrf.mxu0
    %242 = vdwg.mxu0
    %v243 = vtanh.pop %v225
    %v244 = vtanh.pop %v230
    %v245 = vtanh.pop %v235
    %v246 = vtanh.pop %v240
    %v247 = vld [vmem:[%s4] sm:$0xff]
    %v248 = vld [vmem:[%s4 + $0x8] sm:$0xff]
    %v249 = vld [vmem:[%s4 + $0x10] sm:$0xff]
    %v250 = vld [vmem:[%s4 + $0x18] sm:$0xff]
    %v251 = vld [vmem:[%s5] sm:$0xff]
    %v252 = vld [vmem:[%s5 + $0x8] sm:$0xff]
    %v253 = vld [vmem:[%s5 + $0x10] sm:$0xff]
    %v254 = vld [vmem:[%s5 + $0x18] sm:$0xff]
    %256 = vset.pattern.permute.xlu0 0
    %257 = vperm.xlu0 %256, %v251
    %v258 = vpop.permute.xlu0 %257
    %261 = vset.pattern.permute.xlu0 0
    %262 = vperm.xlu0 %261, %v252
    %v263 = vpop.permute.xlu0 %262
    %266 = vset.pattern.permute.xlu0 0
    %267 = vperm.xlu0 %266, %v253
    %v268 = vpop.permute.xlu0 %267
    %271 = vset.pattern.permute.xlu0 0
    %272 = vperm.xlu0 %271, %v254
    %v273 = vpop.permute.xlu0 %272
    %v276 = vsel %vm145, %v247, 0
    %v279 = vsel %vm145, %v248, 0
    %v282 = vsel %vm145, %v249, 0
    %v285 = vsel %vm145, %v250, 0
    %287 = vmatprep.subr.mxu0 0.0
    %288 = vmatpush1.msra.mxu0 0.0
    %289 = vmatprep.subr.mxu0 0.0
    %290 = vmatpush1.msra.mxu0 0.0
    %291 = vmatprep.subr.mxu0 0.0
    %292 = vmatpush1.msra.mxu0 0.0
    %293 = vmatprep.subr.mxu0 0.0
    %294 = vmatpush1.msra.mxu0 0.0
    %295 = vmatprep.subr.mxu0 0.0
    %296 = vmatpush1.msra.mxu0 0.0
    %297 = vmatprep.subr.mxu0 0.0
    %298 = vmatpush1.msra.mxu0 0.0
    %299 = vmatprep.subr.mxu0 0.0
    %300 = vmatpush1.msra.mxu0 0.0
    %301 = vmatprep.subr.mxu0 0.0
    %302 = vmatpush1.msra.mxu0 0.0
    %303 = vmatprep.subr.mxu0 0.0
    %304 = vmatpush1.msra.mxu0 0.0
    %305 = vmatprep.subr.mxu0 0.0
    %306 = vmatpush1.msra.mxu0 0.0
    %307 = vmatprep.subr.mxu0 0.0
    %308 = vmatpush1.msra.mxu0 0.0
    %309 = vmatprep.subr.mxu0 0.0
    %310 = vmatpush1.msra.mxu0 0.0
    %311 = vmatprep.subr.mxu0 0.0
    %312 = vmatpush1.msra.mxu0 0.0
    %313 = vmatprep.subr.mxu0 0.0
    %314 = vmatpush1.msra.mxu0 0.0
    %315 = vmatprep.subr.mxu0 0.0
    %316 = vmatpush1.msra.mxu0 %v25
    %317 = vmatprep.subr.mxu0 0.0
    %318 = vmatpush1.msra.mxu0 %v24
    %319 = vmatprep.subr.mxu0 0.0
    %320 = vmatpush2.msra.mxu0 0.0
    %321 = vmatprep.subr.mxu0 0.0
    %322 = vmatpush2.msra.mxu0 0.0
    %323 = vmatprep.subr.mxu0 0.0
    %324 = vmatpush2.msra.mxu0 0.0
    %325 = vmatprep.subr.mxu0 0.0
    %326 = vmatpush2.msra.mxu0 0.0
    %327 = vmatprep.subr.mxu0 0.0
    %328 = vmatpush2.msra.mxu0 0.0
    %329 = vmatprep.subr.mxu0 0.0
    %330 = vmatpush2.msra.mxu0 0.0
    %331 = vmatprep.subr.mxu0 0.0
    %332 = vmatpush2.msra.mxu0 0.0
    %333 = vmatprep.subr.mxu0 0.0
    %334 = vmatpush2.msra.mxu0 0.0
    %335 = vmatprep.subr.mxu0 0.0
    %336 = vmatpush2.msra.mxu0 0.0
    %337 = vmatprep.subr.mxu0 0.0
    %338 = vmatpush2.msra.mxu0 0.0
    %339 = vmatprep.subr.mxu0 0.0
    %340 = vmatpush2.msra.mxu0 0.0
    %341 = vmatprep.subr.mxu0 0.0
    %342 = vmatpush2.msra.mxu0 0.0
    %343 = vmatprep.subr.mxu0 0.0
    %344 = vmatpush2.msra.mxu0 0.0
    %345 = vmatprep.subr.mxu0 0.0
    %346 = vmatpush2.msra.mxu0 0.0
    %347 = vmatprep.subr.mxu0 0.0
    %348 = vmatpush2.msra.mxu0 0.0
    %349 = vmatprep.subr.mxu0 0.0
    %350 = vmatpush2.msra.mxu0 0.0
    %351 = vmatprep.mubr.f32.mxu0 0.0
    %352 = vmatmul.mubr.f32.gmra.mxu0 %v276
    %v353 = vpop.f32.mrf.mxu0
    %v354 = vadd.f32 %v258, %v353
    %v355 = vpop.f32.mrf.mxu0
    %356 = vmatprep.mubr.f32.mxu0 0.0
    %357 = vmatmul.mubr.f32.gmra.mxu0 %v279
    %v358 = vpop.f32.mrf.mxu0
    %v359 = vadd.f32 %v263, %v358
    %v360 = vpop.f32.mrf.mxu0
    %361 = vmatprep.mubr.f32.mxu0 0.0
    %362 = vmatmul.mubr.f32.gmra.mxu0 %v282
    %v363 = vpop.f32.mrf.mxu0
    %v364 = vadd.f32 %v268, %v363
    %v365 = vpop.f32.mrf.mxu0
    %366 = vmatprep.mubr.f32.mxu0 0.0
    %367 = vmatmul.mubr.f32.gmra.mxu0 %v285
    %v368 = vpop.f32.mrf.mxu0
    %v369 = vadd.f32 %v273, %v368
    %v370 = vpop.f32.mrf.mxu0
    %371 = vdwg.mxu0
    %v372 = vtanh.pop %v354
    %v373 = vtanh.pop %v359
    %v374 = vtanh.pop %v364
    %v375 = vtanh.pop %v369
    %v376 = vmul.f32 %v243, %v372
    %v377 = vmul.f32 %v244, %v373
    %v378 = vmul.f32 %v245, %v374
    %v379 = vmul.f32 %v246, %v375
    %380 = vst [vmem:[#allocation2] sm:$0xff] %v376
    %381 = vst [vmem:[#allocation2 + $0x8] sm:$0xff] %v377
    %382 = vst [vmem:[#allocation2 + $0x10] sm:$0xff] %v378
    %383 = vst [vmem:[#allocation2 + $0x18] sm:$0xff] %v379
    // Predicated region
    $region26: #{tpu_custom_call.1} parent=1 // pred_check
      _
    $region27: #{tpu_custom_call.1} parent=1 // pred_check_branch
      %385 = sbr.rel (0) target = $region29
    $region28: #{tpu_custom_call.1} parent=1 // pred_region
      %s387 = ssub.s32 512, 512
      %388 = vsyncadd [#allocation3], %s387
      %s389 = sshll.u32 [#allocation2], 4
      %s390 = int_to_ptr.vmem [resolvable:$true] %s389
      %395 = dma.vmem_to_hbm [thread:$0]  %s390, 512, %s6, [#allocation3], 128, 128, 8
    $region29: #{tpu_custom_call.1} parent=1 // pred_fallthru
      _
    // Predicated region
    $region30: #{tpu_custom_call.1} parent=1 // pred_check
      _
    $region31: #{tpu_custom_call.1} parent=1 // pred_check_branch
      %397 = sbr.rel (0) target = $region33
    $region32: #{tpu_custom_call.1} parent=1 // pred_region
      %398 = dma.done [#allocation3], 512
    $region33: #{tpu_custom_call.1} parent=1 // pred_fallthru
      _
    %399 = vsyncpa [#allocation3], 1

</llo_original>
